<compile_context>
chip_gen: v5e
topology: v5e:2x2
jax: 0.10.0
libtpu: 0.0.40
codegen_flags: <defaults>
</compile_context>

<pallas_src>
import functools

import jax
import jax.numpy as jnp
from jax.experimental import pallas as pl
from jax.experimental.pallas import tpu as pltpu


# --------------------------------------------------------------------------- #
# Kernel
# --------------------------------------------------------------------------- #
def _output_kernel(x_ref, wt_ref, b_ref, res_ref, o_ref):
    # x_ref:   (TM, K)  flattened hidden_states tile (pipelined)
    # wt_ref:  (K, N)   pre-transposed Linear weight (VMEM-resident, 1 buffer)
    # b_ref:   (1, N)   bias (VMEM-resident, 1 buffer)
    # res_ref: (TM, N)  residual (input_tensor) tile (pipelined)
    # o_ref:   (TM, N)  output tile
    y = jnp.dot(x_ref[...], wt_ref[...], preferred_element_type=jnp.float32)
    y = y + b_ref[...].astype(jnp.float32)
    # TODO(synk): training-mode dropout (pltpu.prng_random_bits mask) is
    # intentionally not applied; this kernel implements the eval/inference path.
    y = y + res_ref[...].astype(jnp.float32)
    o_ref[...] = y.astype(o_ref.dtype)


# --------------------------------------------------------------------------- #
# Planning helpers (all static / Python-int arithmetic)
# --------------------------------------------------------------------------- #
_SUBLANE = {4: 8, 2: 16, 1: 32}  # f32 -> 8 rows/vreg, bf16 -> 16, int8/fp8 -> 32


def _round_up(x, m):
    return ((x + m - 1) // m) * m


def _sublane(dtype):
    return _SUBLANE.get(jnp.dtype(dtype).itemsize, 8)


def _pick_tm(M, dtype, target=512):
    """Dtype- and MXU-aware M-tile size with >=2 grid iterations when possible."""
    sub = _sublane(dtype)
    m_al = _round_up(M, sub)
    tm = min(target, m_al)
    # Guarantee at least 2 grid steps (dual-TC sharding on v7x, DMA/compute
    # overlap everywhere) whenever M supports two sublane-aligned tiles.
    if m_al >= 2 * sub:
        tm = min(tm, _round_up(pl.cdiv(M, 2), sub))
    # MXU-dense alignment: 256 (v6e/v7x 256x256 MXU), then 128 (v5e), then sublane.
    for align in (256, 128, sub):
        if tm >= align:
            return (tm // align) * align
    return sub


def _vmem_bytes(tm, K, N, x_dtype, w_dtype, out_dtype):
    xsz = jnp.dtype(x_dtype).itemsize
    wsz = jnp.dtype(w_dtype).itemsize
    osz = jnp.dtype(out_dtype).itemsize
    resident = (K * N + N) * wsz                       # single-buffered W^T + bias
    streamed = 2 * tm * (K * xsz + N * xsz + N * osz)  # double-buffered x / res / out
    return resident + streamed


@functools.lru_cache(maxsize=None)
def _plan(M, K, N, x_dtype, w_dtype, out_dtype):
    """Choose (tm, vmem_limit_bytes) from static shapes; generation-aware cap."""
    try:
        phys = int(pltpu.get_tpu_info().vmem_capacity_bytes)
    except Exception:
        phys = 64 * 1024 * 1024            # conservative (v7x); v5e/v6e have 128 MiB
    cap = max(phys - 8 * 1024 * 1024, 16 * 1024 * 1024)  # headroom for Mosaic scratch

    sub = _sublane(x_dtype)
    tm = _pick_tm(M, x_dtype)
    # Shrink TM if the plan does not fit under the per-generation VMEM cap (v7x).
    while tm > sub and _vmem_bytes(tm, K, N, x_dtype, w_dtype, out_dtype) > cap:
        tm = max(((tm // 2) // sub) * sub, sub)
    # TODO(synk): if even the minimum TM does not fit (very large K*N weights),
    # add a K grid axis (last, "arbitrary") with an f32 accumulator scratch.

    est = _vmem_bytes(tm, K, N, x_dtype, w_dtype, out_dtype)
    vmem_limit = int(min(max(int(1.25 * est), 32 * 1024 * 1024), cap))
    return tm, vmem_limit


def _resident_spec(block_shape):
    """Single-buffered, VMEM-resident operand (constant index_map, never re-DMA'd)."""
    idx = lambda i: (0, 0)
    try:
        return pl.BlockSpec(block_shape, idx, pipeline_mode=pl.Buffered(1))
    except Exception:  # older JAX without pipeline_mode / Buffered(1): default 2 buffers
        return pl.BlockSpec(block_shape, idx)


# --------------------------------------------------------------------------- #
# Parameter preparation (one-time, at load — NOT on the forward path)
# --------------------------------------------------------------------------- #
def prepare_dense_params(weight, bias):
    """Convert PyTorch Linear params (weight (N,K), bias (N,)) to kernel layout.

    Returns (wt, b2d) with wt = (K, N) and b2d = (1, N).  Call once at
    parameter-load time so the transpose never costs an HBM round-trip per call.
    """
    wt = jnp.asarray(weight).T
    b2d = jnp.asarray(bias).reshape(1, -1)
    return jax.block_until_ready(wt), jax.block_until_ready(b2d)


# --------------------------------------------------------------------------- #
# Fused forward
# --------------------------------------------------------------------------- #
@functools.partial(jax.jit, static_argnames=("tm", "vmem_limit"))
def _fused_output(hidden_states, input_tensor, wt, b2d, *, tm, vmem_limit):
    B, S, K = hidden_states.shape
    N = input_tensor.shape[-1]
    M = B * S
    out_dtype = jnp.result_type(hidden_states.dtype, wt.dtype, input_tensor.dtype)

    x = hidden_states.reshape(M, K)
    res = input_tensor.reshape(M, N)

    num_tiles = pl.cdiv(M, tm)
    m_pad = num_tiles * tm
    if m_pad != M:  # cdiv grid: pad the streamed rows instead of blowing up TM
        x = jnp.pad(x, ((0, m_pad - M), (0, 0)))
        res = jnp.pad(res, ((0, m_pad - M), (0, 0)))

    cost = pl.CostEstimate(
        flops=2 * M * K * N,
        transcendentals=0,
        bytes_accessed=(M * K * jnp.dtype(hidden_states.dtype).itemsize
                        + M * N * jnp.dtype(input_tensor.dtype).itemsize
                        + K * N * jnp.dtype(wt.dtype).itemsize
                        + M * N * jnp.dtype(out_dtype).itemsize),
    )

    out = pl.pallas_call(
        _output_kernel,
        out_shape=jax.ShapeDtypeStruct((m_pad, N), out_dtype),
        grid_spec=pltpu.PrefetchScalarGridSpec(
            num_scalar_prefetch=0,
            grid=(num_tiles,),
            in_specs=[
                pl.BlockSpec((tm, K), lambda i: (i, 0)),   # x tile (pipelined)
                _resident_spec((K, N)),                    # W^T (resident, 1 buffer)
                _resident_spec((1, N)),                    # bias (resident, 1 buffer)
                pl.BlockSpec((tm, N), lambda i: (i, 0)),   # residual tile (pipelined)
            ],
            out_specs=pl.BlockSpec((tm, N), lambda i: (i, 0)),
        ),
        compiler_params=pltpu.CompilerParams(
            dimension_semantics=("parallel",),  # M tiles independent -> dual-TC on v7x
            vmem_limit_bytes=vmem_limit,
        ),
        cost_estimate=cost,
    )(x, wt, b2d, res)

    if m_pad != M:
        out = out[:M]
    return out.reshape(B, S, N)


def roberta_prelayernorm_output(hidden_states, input_tensor, wt, b2d):
    """hidden_states: (B,S,K); input_tensor: (B,S,N); wt: (K,N) pre-transposed; b2d: (1,N)."""
    B, S, K = hidden_states.shape
    Bn, Sn, N = input_tensor.shape
    assert (B, S) == (Bn, Sn), "batch/seq mismatch between hidden_states and input_tensor"
    assert wt.shape == (K, N), f"wt must be pre-transposed (intermediate={K}, hidden={N})"
    assert b2d.shape == (1, N)

    out_dtype = jnp.result_type(hidden_states.dtype, wt.dtype, input_tensor.dtype)
    tm, vmem_limit = _plan(B * S, K, N,
                           jnp.dtype(hidden_states.dtype), jnp.dtype(wt.dtype),
                           jnp.dtype(out_dtype))
    return _fused_output(hidden_states, input_tensor, wt, b2d,
                         tm=tm, vmem_limit=vmem_limit)


# --------------------------------------------------------------------------- #
# Demo / correctness check
# --------------------------------------------------------------------------- #
if __name__ == "__main__":
    # Small but lane-friendly config: hidden=128, intermediate=4*hidden=512.
    B, S = 2, 8
    hidden_size, intermediate_size = 128, 512

    key = jax.random.PRNGKey(0)
    k1, k2, k3, k4 = jax.random.split(key, 4)

    hidden_states = jax.random.normal(k1, (B, S, intermediate_size), dtype=jnp.float32)
    input_tensor = jax.random.normal(k2, (B, S, hidden_size), dtype=jnp.float32)
    # PyTorch Linear convention: weight (out_features, in_features) = (hidden, intermediate)
    weight = jax.random.normal(k3, (hidden_size, intermediate_size), dtype=jnp.float32)
    weight = weight * (1.0 / jnp.sqrt(intermediate_size))
    bias = jax.random.normal(k4, (hidden_size,), dtype=jnp.float32) * 0.02

    # One-time parameter prep (parameter-load time, NOT per forward call).
    wt, b2d = prepare_dense_params(weight, bias)

    out = roberta_prelayernorm_output(hidden_states, input_tensor, wt, b2d)
    out = jax.block_until_ready(out)

    # Reference check in plain JAX (eval mode: dropout is identity).
    ref = hidden_states @ weight.T + bias + input_tensor
    assert out.shape == ref.shape, f"shape mismatch {out.shape} vs {ref.shape}"
    assert jnp.allclose(out, ref, atol=1e-4, rtol=1e-4), "mismatch vs reference"

    print("KERNEL_OK")
</pallas_src>

<mosaic_0001>
module attributes {stable_mosaic.version = 11 : i64} {
  func.func @_output_kernel(%arg0: i32, %arg1: memref<8x512xf32, #tpu.memory_space<vmem>>, %arg2: memref<512x128xf32, #tpu.memory_space<vmem>>, %arg3: memref<1x128xf32, #tpu.memory_space<vmem>>, %arg4: memref<8x128xf32, #tpu.memory_space<vmem>>, %arg5: memref<8x128xf32, #tpu.memory_space<vmem>>) attributes {dimension_semantics = [#tpu.dimension_semantics<parallel>], iteration_bounds = array<i64: 2>, scalar_prefetch = 0 : i64, scratch_operands = 0 : i64, tpu.core_type = #tpu.core_type<tc>, window_params = [{transform_indices = @transform_0, window_bounds = array<i64: 8, 512>}, {pipeline_mode = #tpu.pipeline_mode<synchronous>, transform_indices = @transform_1, window_bounds = array<i64: 512, 128>}, {pipeline_mode = #tpu.pipeline_mode<synchronous>, transform_indices = @transform_2, window_bounds = array<i64: 1, 128>}, {transform_indices = @transform_3, window_bounds = array<i64: 8, 128>}, {transform_indices = @transform_4, window_bounds = array<i64: 8, 128>}]} {
    %c0 = arith.constant 0 : index
    %c0_0 = arith.constant 0 : index
    %0 = vector.load %arg1[%c0, %c0_0] : memref<8x512xf32, #tpu.memory_space<vmem>>, vector<8x512xf32>
    %c0_1 = arith.constant 0 : index
    %c0_2 = arith.constant 0 : index
    %1 = vector.load %arg2[%c0_1, %c0_2] : memref<512x128xf32, #tpu.memory_space<vmem>>, vector<512x128xf32>
    %cst = arith.constant dense<0.000000e+00> : vector<8x128xf32>
    %2 = tpu.matmul %0, %1, %cst {dimension_numbers = #tpu.dot_dimension_numbers<[1], [0], [0], [1], [0, 0, 1, 1], [], []>} : vector<8x512xf32>, vector<512x128xf32>, vector<8x128xf32> -> vector<8x128xf32>
    %c0_3 = arith.constant 0 : index
    %c0_4 = arith.constant 0 : index
    %3 = vector.load %arg3[%c0_3, %c0_4] : memref<1x128xf32, #tpu.memory_space<vmem>>, vector<1x128xf32>
    %4 = vector.broadcast %3 : vector<1x128xf32> to vector<8x128xf32>
    %5 = arith.addf %2, %4 : vector<8x128xf32>
    %c0_5 = arith.constant 0 : index
    %c0_6 = arith.constant 0 : index
    %6 = vector.load %arg4[%c0_5, %c0_6] : memref<8x128xf32, #tpu.memory_space<vmem>>, vector<8x128xf32>
    %7 = arith.addf %5, %6 : vector<8x128xf32>
    %c0_7 = arith.constant 0 : index
    %c0_8 = arith.constant 0 : index
    %8 = vector.load %arg5[%c0_7, %c0_8] : memref<8x128xf32, #tpu.memory_space<vmem>>, vector<8x128xf32>
    tpu.vector_store %arg5[%c0_7, %c0_8], %7 {strides = array<i32>} : memref<8x128xf32, #tpu.memory_space<vmem>>, vector<8x128xf32>,
    return
  }
  func.func @transform_0(%arg0: i32) -> (i32, i32) {
    %c0_i32 = arith.constant 0 : i32
    %c0_i32_0 = arith.constant 0 : i32
    return %arg0, %c0_i32 : i32, i32
  }
  func.func @transform_1(%arg0: i32) -> (i32, i32) {
    %c0_i32 = arith.constant 0 : i32
    %c0_i32_0 = arith.constant 0 : i32
    %c0_i32_1 = arith.constant 0 : i32
    return %c0_i32, %c0_i32_0 : i32, i32
  }
  func.func @transform_2(%arg0: i32) -> (i32, i32) {
    %c0_i32 = arith.constant 0 : i32
    %c0_i32_0 = arith.constant 0 : i32
    %c0_i32_1 = arith.constant 0 : i32
    return %c0_i32, %c0_i32_0 : i32, i32
  }
  func.func @transform_3(%arg0: i32) -> (i32, i32) {
    %c0_i32 = arith.constant 0 : i32
    %c0_i32_0 = arith.constant 0 : i32
    return %arg0, %c0_i32 : i32, i32
  }
  func.func @transform_4(%arg0: i32) -> (i32, i32) {
    %c0_i32 = arith.constant 0 : i32
    %c0_i32_0 = arith.constant 0 : i32
    return %arg0, %c0_i32 : i32, i32
  }
}

</mosaic_0001>

<llo_original>
// kernel: _fused_output.1
$region0: #{_fused_output.1}
  #allocation0 [shape = 'u32[]', space=smem, size = 0x4, offset = 0x4, fixed_abs, tag = 'smem constant byte address 0x4 - core index']
  #allocation1 [shape = 'u32[72,128]{1,0:T(1,128)}', space=vmem, size = 0x9000, scoped, tag = 'internal scratch']
  %s0 = inlined_call_operand.hbm [shape: f32[16,512], index: 0, kind: input, shape index: {}]
  %s1 = inlined_call_operand.hbm [shape: f32[512,128], index: 1, kind: input, shape index: {}]
  %s2 = inlined_call_operand.vmem [shape: f32[1,128], index: 2, kind: input, shape index: {}]
  %s3 = inlined_call_operand.hbm [shape: f32[16,128], index: 3, kind: input, shape index: {}]
  %s4 = inlined_call_operand.hbm [shape: f32[16,128], index: 4, kind: output, shape index: {}]
  %s5 = sld [smem:[#allocation0]]
  $region61: #{_fused_output.1} parent=0
    _
  %s7 = ssub.s32 1, %s5
  %s8 = scalar_select 0, %s7, %s5
  $region1: #{_fused_output.1} parent=0
    #allocation2 [shape = 'u8[32768]{0}', space=vmem, size = 0x8000, scoped, tag = 'input window, operand 0']
    #allocation3 [shape = 's32[2]{0}', space=sflag, size = 0x8, scoped, tag = 'scoped memory for _fused_output.1']
    #allocation4 [shape = 's32[2]{0}', space=sflag, size = 0x8, scoped, tag = 'scoped memory for _fused_output.1']
    #allocation5 [shape = 'u8[262144]{0}', space=vmem, size = 0x40000, scoped, tag = 'input window, operand 1, single buffered']
    #allocation6 [shape = 's32[1]{0}', space=sflag, size = 0x4, scoped, tag = 'scoped memory for _fused_output.1']
    #allocation7 [shape = 'u8[8192]{0}', space=vmem, size = 0x2000, scoped, tag = 'input window, operand 3']
    #allocation8 [shape = 'u8[8192]{0}', space=vmem, size = 0x2000, scoped, tag = 'output window, operand 0']
    %9 = vsyncpa [#allocation3], 0
    %s10 = scalar_lea.sflag [#allocation3], 1
    %11 = vsyncpa %s10, 0
    %12 = vsyncpa [#allocation6], 0
    %13 = vsyncpa [#allocation4], 0
    %s14 = scalar_lea.sflag [#allocation4], 1
    %15 = vsyncpa %s14, 0
    loop: start=0, step=1, limit=4
    $region2: #{_fused_output.1} parent=1 // loop_pre_header
      _
    $region3: #{_fused_output.1} parent=1 // loop_header
      %s17 = sphi 0, %s21
      %p18 = scmp.ge.s32.totalorder %s17, 4
      %s27 = sphi 0, %s29
      %s30 = sphi 0, %s27
      %s31 = sphi 0, %s30
      %s47 = sphi 0, %s31
      %s51 = sphi 0, %s51
      %s53 = sphi 0, %s51
      %s54 = sphi 0, %s53
      %s68 = sphi 0, %s54
      %s72 = sphi 0, %s72
      %s74 = sphi 0, %s72
      %s75 = sphi 0, %s74
      %s89 = sphi 0, %s75
      %s95 = sphi 0, %s97
      %s98 = sphi 0, %s95
      %s99 = sphi 0, %s98
      %s115 = sphi 0, %s99
      %s121 = sphi 0, %s123
      %s124 = sphi 0, %s121
      %s125 = sphi 0, %s124
      %s141 = sphi 0, %s125
    $region4: #{_fused_output.1} parent=1 // loop_header_branch
      %20 = sbr.rel (%p18) target = $region8
    $region5: #{_fused_output.1} parent=1 // loop_body
      %s22 = ssub.s32 %s17, 1
      %s23 = ssub.s32 %s17, 2
      %s24 = sadd.s32 %s17, 1
      %s25 = ssub.s32 %s17, %s24
      %p26 = scmp.eq.s32.totalorder %s25, 0
      %s28 = sadd.s32 %s27, 1
      %s29 = scalar_select %p26, %s27, %s28
      %p32 = pneg %p26
      %p33 = scmp.eq.s32.totalorder %s17, 1
      %p34 = por %p32, %p33
      %p35 = scmp.ne.s32.totalorder %s27, %s30
      %p36 = scmp.eq.s32.totalorder %s17, 0
      %p37 = por %p35, %p36
      %p38 = scmp.ne.s32.totalorder %s27, %s30
      %p39 = scmp.eq.s32.totalorder %s22, 1
      %p40 = por %p38, %p39
      %p41 = scmp.ne.s32.totalorder %s30, %s31
      %p42 = scmp.eq.s32.totalorder %s22, 0
      %p43 = por %p41, %p42
      %p44 = scmp.ne.s32.totalorder %s30, %s31
      %p45 = scmp.eq.s32.totalorder %s23, 1
      %p46 = por %p44, %p45
      %p48 = scmp.ne.s32.totalorder %s31, %s47
      %p49 = scmp.eq.s32.totalorder %s23, 0
      %p50 = por %p48, %p49
      %s52 = sadd.s32 %s51, 1
      %p55 = scmp.eq.s32.totalorder %s17, 1
      %p56 = scmp.ne.s32.totalorder %s51, %s53
      %p57 = scmp.eq.s32.totalorder %s17, 0
      %p58 = por %p56, %p57
      %p59 = scmp.ne.s32.totalorder %s51, %s53
      %p60 = scmp.eq.s32.totalorder %s22, 1
      %p61 = por %p59, %p60
      %p62 = scmp.ne.s32.totalorder %s53, %s54
      %p63 = scmp.eq.s32.totalorder %s22, 0
      %p64 = por %p62, %p63
      %p65 = scmp.ne.s32.totalorder %s53, %s54
      %p66 = scmp.eq.s32.totalorder %s23, 1
      %p67 = por %p65, %p66
      %p69 = scmp.ne.s32.totalorder %s54, %s68
      %p70 = scmp.eq.s32.totalorder %s23, 0
      %p71 = por %p69, %p70
      %s73 = sadd.s32 %s72, 1
      %p76 = scmp.eq.s32.totalorder %s17, 1
      %p77 = scmp.ne.s32.totalorder %s72, %s74
      %p78 = scmp.eq.s32.totalorder %s17, 0
      %p79 = por %p77, %p78
      %p80 = scmp.ne.s32.totalorder %s72, %s74
      %p81 = scmp.eq.s32.totalorder %s22, 1
      %p82 = por %p80, %p81
      %p83 = scmp.ne.s32.totalorder %s74, %s75
      %p84 = scmp.eq.s32.totalorder %s22, 0
      %p85 = por %p83, %p84
      %p86 = scmp.ne.s32.totalorder %s74, %s75
      %p87 = scmp.eq.s32.totalorder %s23, 1
      %p88 = por %p86, %p87
      %p90 = scmp.ne.s32.totalorder %s75, %s89
      %p91 = scmp.eq.s32.totalorder %s23, 0
      %p92 = por %p90, %p91
      %s93 = ssub.s32 %s17, %s24
      %p94 = scmp.eq.s32.totalorder %s93, 0
      %s96 = sadd.s32 %s95, 1
      %s97 = scalar_select %p94, %s95, %s96
      %p100 = pneg %p94
      %p101 = scmp.eq.s32.totalorder %s17, 1
      %p102 = por %p100, %p101
      %p103 = scmp.ne.s32.totalorder %s95, %s98
      %p104 = scmp.eq.s32.totalorder %s17, 0
      %p105 = por %p103, %p104
      %p106 = scmp.ne.s32.totalorder %s95, %s98
      %p107 = scmp.eq.s32.totalorder %s22, 1
      %p108 = por %p106, %p107
      %p109 = scmp.ne.s32.totalorder %s98, %s99
      %p110 = scmp.eq.s32.totalorder %s22, 0
      %p111 = por %p109, %p110
      %p112 = scmp.ne.s32.totalorder %s98, %s99
      %p113 = scmp.eq.s32.totalorder %s23, 1
      %p114 = por %p112, %p113
      %p116 = scmp.ne.s32.totalorder %s99, %s115
      %p117 = scmp.eq.s32.totalorder %s23, 0
      %p118 = por %p116, %p117
      %s119 = ssub.s32 %s17, %s24
      %p120 = scmp.eq.s32.totalorder %s119, 0
      %s122 = sadd.s32 %s121, 1
      %s123 = scalar_select %p120, %s121, %s122
      %p126 = pneg %p120
      %p127 = scmp.eq.s32.totalorder %s17, 1
      %p128 = por %p126, %p127
      %p129 = scmp.ne.s32.totalorder %s121, %s124
      %p130 = scmp.eq.s32.totalorder %s17, 0
      %p131 = por %p129, %p130
      %p132 = scmp.ne.s32.totalorder %s121, %s124
      %p133 = scmp.eq.s32.totalorder %s22, 1
      %p134 = por %p132, %p133
      %p135 = scmp.ne.s32.totalorder %s124, %s125
      %p136 = scmp.eq.s32.totalorder %s22, 0
      %p137 = por %p135, %p136
      %p138 = scmp.ne.s32.totalorder %s124, %s125
      %p139 = scmp.eq.s32.totalorder %s23, 1
      %p140 = por %p138, %p139
      %p142 = scmp.ne.s32.totalorder %s125, %s141
      %p143 = scmp.eq.s32.totalorder %s23, 0
      %p144 = por %p142, %p143
      %p145 = scmp.le.s32.totalorder 1, %s17
      %p146 = scmp.lt.s32.totalorder %s17, 3
      %p147 = pnand %p145, %p146
      %p148 = pneg %p147
      // Predicated region
      $region9: #{_fused_output.1} parent=5 // pred_check
        _
      $region10: #{_fused_output.1} parent=5 // pred_check_branch
        %150 = sbr.rel (%p147) target = $region12
      $region11: #{_fused_output.1} parent=5 // pred_region
        %s151 = ssub.s32 %s17, 1
        // Predicated region
        $region13: #{_fused_output.1} parent=11 // pred_check
          %p152 = pneg %p64
        $region14: #{_fused_output.1} parent=11 // pred_check_branch
          %154 = sbr.rel (%p152) target = $region16
        $region15: #{_fused_output.1} parent=11 // pred_region
          %156 = vsyncadd [#allocation6], 0
          %s157 = sshll.u32 %s1, 4
          %s158 = int_to_ptr.hbm [resolvable:$true] %s157
          %s159 = sshll.u32 [#allocation5], 4
          %s160 = int_to_ptr.vmem [resolvable:$true] %s159
          %165 = dma.hbm_to_vmem [thread:$0]  %s158, 8192, %s160, [#allocation6], 128, 128, 8
        $region16: #{_fused_output.1} parent=11 // pred_fallthru
          _
        // Predicated region
        $region17: #{_fused_output.1} parent=11 // pred_check
          %p166 = pneg %p85
        $region18: #{_fused_output.1} parent=11 // pred_check_branch
          %168 = sbr.rel (%p166) target = $region20
        $region19: #{_fused_output.1} parent=11 // pred_region
          _
        $region20: #{_fused_output.1} parent=11 // pred_fallthru
          _
      $region12: #{_fused_output.1} parent=5 // pred_fallthru
        _
      %p169 = scmp.lt.s32.totalorder %s17, 2
      // Predicated region
      $region21: #{_fused_output.1} parent=5 // pred_check
        %p170 = pneg %p169
      $region22: #{_fused_output.1} parent=5 // pred_check_branch
        %172 = sbr.rel (%p170) target = $region24
      $region23: #{_fused_output.1} parent=5 // pred_region
        // Predicated region
        $region25: #{_fused_output.1} parent=23 // pred_check
          %p173 = pneg %p37
        $region26: #{_fused_output.1} parent=23 // pred_check_branch
          %175 = sbr.rel (%p173) target = $region28
        $region27: #{_fused_output.1} parent=23 // pred_region
          %s176 = sand.u32 %s17, 1
          %s177 = scalar_lea.sflag [#allocation3], %s176
          %s178 = sand.u32 %s27, 1
          %s179 = smul.addr %s178, 32
          %s180 = scalar_lea.vmem [#allocation2], %s179
          %182 = vsyncadd %s177, 0
          %s183 = smul.addr %s17, 4
          %s184 = smul.addr %s183, 8
          %s185 = scalar_lea.hbm %s0, %s184
          %s187 = sshll.u32 %s185, 4
          %s188 = int_to_ptr.hbm [resolvable:$true] %s187
          %s189 = sshll.u32 %s180, 4
          %s190 = int_to_ptr.vmem [resolvable:$true] %s189
          %192 = dma.hbm_to_vmem [thread:$0]  %s188, 512, %s190, %s177
        $region28: #{_fused_output.1} parent=23 // pred_fallthru
          _
        // Predicated region
        $region29: #{_fused_output.1} parent=23 // pred_check
          %p193 = pneg %p105
        $region30: #{_fused_output.1} parent=23 // pred_check_branch
          %195 = sbr.rel (%p193) target = $region32
        $region31: #{_fused_output.1} parent=23 // pred_region
          %s196 = sand.u32 %s17, 1
          %s197 = scalar_lea.sflag [#allocation3], %s196
          %s198 = sand.u32 %s95, 1
          %s199 = smul.addr %s198, 8
          %s200 = scalar_lea.vmem [#allocation7], %s199
          %202 = vsyncadd %s197, 0
          %s203 = smul.addr %s17, 8
          %s204 = scalar_lea.hbm %s3, %s203
          %s206 = sshll.u32 %s204, 4
          %s207 = int_to_ptr.hbm [resolvable:$true] %s206
          %s208 = sshll.u32 %s200, 4
          %s209 = int_to_ptr.vmem [resolvable:$true] %s208
          %211 = dma.hbm_to_vmem [thread:$0]  %s207, 128, %s209, %s197
        $region32: #{_fused_output.1} parent=23 // pred_fallthru
          _
      $region24: #{_fused_output.1} parent=5 // pred_fallthru
        _
      %p212 = scmp.le.s32.totalorder 1, %s17
      %p213 = scmp.lt.s32.totalorder %s17, 3
      %p214 = pnand %p212, %p213
      %p215 = pneg %p214
      // Predicated region
      $region33: #{_fused_output.1} parent=5 // pred_check
        _
      $region34: #{_fused_output.1} parent=5 // pred_check_branch
        %217 = sbr.rel (%p214) target = $region36
      $region35: #{_fused_output.1} parent=5 // pred_region
        %s218 = ssub.s32 %s17, 1
        %s219 = sand.u32 %s22, 1
        %s220 = scalar_lea.sflag [#allocation3], %s219
        %s221 = sand.u32 %s30, 1
        %s222 = smul.addr %s221, 32
        %s223 = scalar_lea.vmem [#allocation2], %s222
        // Predicated region
        $region37: #{_fused_output.1} parent=35 // pred_check
          %p224 = pneg %p43
        $region38: #{_fused_output.1} parent=35 // pred_check_branch
          %226 = sbr.rel (%p224) target = $region40
        $region39: #{_fused_output.1} parent=35 // pred_region
          %228 = dma.done %s220, 512
        $region40: #{_fused_output.1} parent=35 // pred_fallthru
          _
        // Predicated region
        $region41: #{_fused_output.1} parent=35 // pred_check
          %p229 = pneg %p64
        $region42: #{_fused_output.1} parent=35 // pred_check_branch
          %231 = sbr.rel (%p229) target = $region44
        $region43: #{_fused_output.1} parent=35 // pred_region
          %233 = dma.done [#allocation6], 8192
        $region44: #{_fused_output.1} parent=35 // pred_fallthru
          _
        %s234 = sand.u32 %s22, 1
        %s235 = scalar_lea.sflag [#allocation3], %s234
        %s236 = sand.u32 %s98, 1
        %s237 = smul.addr %s236, 8
        %s238 = scalar_lea.vmem [#allocation7], %s237
        // Predicated region
        $region45: #{_fused_output.1} parent=35 // pred_check
          %p239 = pneg %p111
        $region46: #{_fused_output.1} parent=35 // pred_check_branch
          %241 = sbr.rel (%p239) target = $region48
        $region47: #{_fused_output.1} parent=35 // pred_region
          %243 = dma.done %s235, 128
        $region48: #{_fused_output.1} parent=35 // pred_fallthru
          _
        %s244 = sand.u32 %s22, 1
        %s245 = scalar_lea.sflag [#allocation3], %s244
        %s246 = sand.u32 %s30, 1
        %s247 = smul.addr %s246, 32
        %s248 = scalar_lea.vmem [#allocation2], %s247
        %p249 = pneg %p43
        %p250 = pneg %p40
        %p251 = pneg %p64
        %p252 = pneg %p61
        %p253 = pneg %p85
        %p254 = pneg %p82
        %s255 = sand.u32 %s22, 1
        %s256 = scalar_lea.sflag [#allocation3], %s255
        %s257 = sand.u32 %s98, 1
        %s258 = smul.addr %s257, 8
        %s259 = scalar_lea.vmem [#allocation7], %s258
        %p260 = pneg %p111
        %p261 = pneg %p108
        %p262 = pneg %p137
        %p263 = pneg %p134
        %s264 = sand.u32 %s124, 1
        %s265 = scalar_lea.sflag [#allocation4], %s264
        %s266 = sand.u32 %s124, 1
        %s267 = smul.addr %s266, 8
        %s268 = scalar_lea.vmem [#allocation8], %s267
        %v269 = vld [vmem:[%s223] sm:$0xff]
        %v270 = vld [vmem:[%s223 + $0x8] sm:$0xff]
        %v271 = vld [vmem:[%s223 + $0x10] sm:$0xff]
        %v272 = vld [vmem:[%s223 + $0x18] sm:$0xff]
        %v273 = vld [vmem:[#allocation5] sm:$0xff]
        %v274 = vld [vmem:[#allocation5 + $0x8] sm:$0xff]
        %v275 = vld [vmem:[#allocation5 + $0x10] sm:$0xff]
        %v276 = vld [vmem:[#allocation5 + $0x18] sm:$0xff]
        %v277 = vld [vmem:[#allocation5 + $0x20] sm:$0xff]
        %v278 = vld [vmem:[#allocation5 + $0x28] sm:$0xff]
        %v279 = vld [vmem:[#allocation5 + $0x30] sm:$0xff]
        %v280 = vld [vmem:[#allocation5 + $0x38] sm:$0xff]
        %v281 = vld [vmem:[#allocation5 + $0x40] sm:$0xff]
        %v282 = vld [vmem:[#allocation5 + $0x48] sm:$0xff]
        %v283 = vld [vmem:[#allocation5 + $0x50] sm:$0xff]
        %v284 = vld [vmem:[#allocation5 + $0x58] sm:$0xff]
        %v285 = vld [vmem:[#allocation5 + $0x60] sm:$0xff]
        %v286 = vld [vmem:[#allocation5 + $0x68] sm:$0xff]
        %v287 = vld [vmem:[#allocation5 + $0x70] sm:$0xff]
        %v288 = vld [vmem:[#allocation5 + $0x78] sm:$0xff]
        %v289 = vld [vmem:[#allocation5 + $0x80] sm:$0xff]
        %v290 = vld [vmem:[#allocation5 + $0x88] sm:$0xff]
        %v291 = vld [vmem:[#allocation5 + $0x90] sm:$0xff]
        %v292 = vld [vmem:[#allocation5 + $0x98] sm:$0xff]
        %v293 = vld [vmem:[#allocation5 + $0xa0] sm:$0xff]
        %v294 = vld [vmem:[#allocation5 + $0xa8] sm:$0xff]
        %v295 = vld [vmem:[#allocation5 + $0xb0] sm:$0xff]
        %v296 = vld [vmem:[#allocation5 + $0xb8] sm:$0xff]
        %v297 = vld [vmem:[#allocation5 + $0xc0] sm:$0xff]
        %v298 = vld [vmem:[#allocation5 + $0xc8] sm:$0xff]
        %v299 = vld [vmem:[#allocation5 + $0xd0] sm:$0xff]
        %v300 = vld [vmem:[#allocation5 + $0xd8] sm:$0xff]
        %v301 = vld [vmem:[#allocation5 + $0xe0] sm:$0xff]
        %v302 = vld [vmem:[#allocation5 + $0xe8] sm:$0xff]
        %v303 = vld [vmem:[#allocation5 + $0xf0] sm:$0xff]
        %v304 = vld [vmem:[#allocation5 + $0xf8] sm:$0xff]
        %v305 = vld [vmem:[#allocation5 + $0x100] sm:$0xff]
        %v306 = vld [vmem:[#allocation5 + $0x108] sm:$0xff]
        %v307 = vld [vmem:[#allocation5 + $0x110] sm:$0xff]
        %v308 = vld [vmem:[#allocation5 + $0x118] sm:$0xff]
        %v309 = vld [vmem:[#allocation5 + $0x120] sm:$0xff]
        %v310 = vld [vmem:[#allocation5 + $0x128] sm:$0xff]
        %v311 = vld [vmem:[#allocation5 + $0x130] sm:$0xff]
        %v312 = vld [vmem:[#allocation5 + $0x138] sm:$0xff]
        %v313 = vld [vmem:[#allocation5 + $0x140] sm:$0xff]
        %v314 = vld [vmem:[#allocation5 + $0x148] sm:$0xff]
        %v315 = vld [vmem:[#allocation5 + $0x150] sm:$0xff]
        %v316 = vld [vmem:[#allocation5 + $0x158] sm:$0xff]
        %v317 = vld [vmem:[#allocation5 + $0x160] sm:$0xff]
        %v318 = vld [vmem:[#allocation5 + $0x168] sm:$0xff]
        %v319 = vld [vmem:[#allocation5 + $0x170] sm:$0xff]
        %v320 = vld [vmem:[#allocation5 + $0x178] sm:$0xff]
        %v321 = vld [vmem:[#allocation5 + $0x180] sm:$0xff]
        %v322 = vld [vmem:[#allocation5 + $0x188] sm:$0xff]
        %v323 = vld [vmem:[#allocation5 + $0x190] sm:$0xff]
        %v324 = vld [vmem:[#allocation5 + $0x198] sm:$0xff]
        %v325 = vld [vmem:[#allocation5 + $0x1a0] sm:$0xff]
        %v326 = vld [vmem:[#allocation5 + $0x1a8] sm:$0xff]
        %v327 = vld [vmem:[#allocation5 + $0x1b0] sm:$0xff]
        %v328 = vld [vmem:[#allocation5 + $0x1b8] sm:$0xff]
        %v329 = vld [vmem:[#allocation5 + $0x1c0] sm:$0xff]
        %v330 = vld [vmem:[#allocation5 + $0x1c8] sm:$0xff]
        %v331 = vld [vmem:[#allocation5 + $0x1d0] sm:$0xff]
        %v332 = vld [vmem:[#allocation5 + $0x1d8] sm:$0xff]
        %v333 = vld [vmem:[#allocation5 + $0x1e0] sm:$0xff]
        %v334 = vld [vmem:[#allocation5 + $0x1e8] sm:$0xff]
        %v335 = vld [vmem:[#allocation5 + $0x1f0] sm:$0xff]
        %v336 = vld [vmem:[#allocation5 + $0x1f8] sm:$0xff]
        %v337 = vld [vmem:[%s2] sm:$0x1]
        %v339 = vperm.slane %v337, 0
        %341 = vmatpush.msra.mxu0 %v288
        %342 = vmatpush.msra.mxu0 %v287
        %343 = vmatpush.msra.mxu0 %v286
        %344 = vmatpush.msra.mxu0 %v285
        %345 = vmatpush.msra.mxu0 %v284
        %346 = vmatpush.msra.mxu0 %v283
        %347 = vmatpush.msra.mxu0 %v282
        %348 = vmatpush.msra.mxu0 %v281
        %349 = vmatpush.msra.mxu0 %v280
        %350 = vmatpush.msra.mxu0 %v279
        %351 = vmatpush.msra.mxu0 %v278
        %352 = vmatpush.msra.mxu0 %v277
        %353 = vmatpush.msra.mxu0 %v276
        %354 = vmatpush.msra.mxu0 %v275
        %355 = vmatpush.msra.mxu0 %v274
        %356 = vmatpush.msra.mxu0 %v273
        %357 = vmatmul.f32.gmra.mxu0 %v269
        %v358 = vpop.f32.mrf.mxu0
        %v359 = vadd.f32 %v339, %v358
        %360 = vdwg.mxu0
        %361 = vmatpush.msra.mxu0 %v304
        %362 = vmatpush.msra.mxu0 %v303
        %363 = vmatpush.msra.mxu0 %v302
        %364 = vmatpush.msra.mxu0 %v301
        %365 = vmatpush.msra.mxu0 %v300
        %366 = vmatpush.msra.mxu0 %v299
        %367 = vmatpush.msra.mxu0 %v298
        %368 = vmatpush.msra.mxu0 %v297
        %369 = vmatpush.msra.mxu0 %v296
        %370 = vmatpush.msra.mxu0 %v295
        %371 = vmatpush.msra.mxu0 %v294
        %372 = vmatpush.msra.mxu0 %v293
        %373 = vmatpush.msra.mxu0 %v292
        %374 = vmatpush.msra.mxu0 %v291
        %375 = vmatpush.msra.mxu0 %v290
        %376 = vmatpush.msra.mxu0 %v289
        %377 = vmatmul.f32.gmra.mxu0 %v270
        %v378 = vpop.f32.mrf.mxu0
        %v379 = vadd.f32 %v359, %v378
        %380 = vdwg.mxu0
        %381 = vmatpush.msra.mxu0 %v320
        %382 = vmatpush.msra.mxu0 %v319
        %383 = vmatpush.msra.mxu0 %v318
        %384 = vmatpush.msra.mxu0 %v317
        %385 = vmatpush.msra.mxu0 %v316
        %386 = vmatpush.msra.mxu0 %v315
        %387 = vmatpush.msra.mxu0 %v314
        %388 = vmatpush.msra.mxu0 %v313
        %389 = vmatpush.msra.mxu0 %v312
        %390 = vmatpush.msra.mxu0 %v311
        %391 = vmatpush.msra.mxu0 %v310
        %392 = vmatpush.msra.mxu0 %v309
        %393 = vmatpush.msra.mxu0 %v308
        %394 = vmatpush.msra.mxu0 %v307
        %395 = vmatpush.msra.mxu0 %v306
        %396 = vmatpush.msra.mxu0 %v305
        %397 = vmatmul.f32.gmra.mxu0 %v271
        %v398 = vpop.f32.mrf.mxu0
        %v399 = vadd.f32 %v379, %v398
        %400 = vdwg.mxu0
        %401 = vmatpush.msra.mxu0 %v336
        %402 = vmatpush.msra.mxu0 %v335
        %403 = vmatpush.msra.mxu0 %v334
        %404 = vmatpush.msra.mxu0 %v333
        %405 = vmatpush.msra.mxu0 %v332
        %406 = vmatpush.msra.mxu0 %v331
        %407 = vmatpush.msra.mxu0 %v330
        %408 = vmatpush.msra.mxu0 %v329
        %409 = vmatpush.msra.mxu0 %v328
        %410 = vmatpush.msra.mxu0 %v327
        %411 = vmatpush.msra.mxu0 %v326
        %412 = vmatpush.msra.mxu0 %v325
        %413 = vmatpush.msra.mxu0 %v324
        %414 = vmatpush.msra.mxu0 %v323
        %415 = vmatpush.msra.mxu0 %v322
        %416 = vmatpush.msra.mxu0 %v321
        %417 = vmatmul.f32.gmra.mxu0 %v272
        %v418 = vpop.f32.mrf.mxu0
        %v419 = vadd.f32 %v399, %v418
        %420 = vdwg.mxu0
        %v421 = vld [vmem:[%s238] sm:$0xff]
        %v422 = vadd.f32 %v419, %v421
        %423 = vst [vmem:[%s268] sm:$0xff] %v422
        %s424 = sand.u32 %s124, 1
        %s425 = scalar_lea.sflag [#allocation4], %s424
        %s426 = sand.u32 %s124, 1
        %s427 = smul.addr %s426, 8
        %s428 = scalar_lea.vmem [#allocation8], %s427
        // Predicated region
        $region49: #{_fused_output.1} parent=35 // pred_check
          %p429 = pneg %p134
        $region50: #{_fused_output.1} parent=35 // pred_check_branch
          %431 = sbr.rel (%p429) target = $region52
        $region51: #{_fused_output.1} parent=35 // pred_region
          %433 = vsyncadd %s425, 0
          %s434 = smul.addr %s22, 8
          %s435 = scalar_lea.hbm %s4, %s434
          %s437 = sshll.u32 %s428, 4
          %s438 = int_to_ptr.vmem [resolvable:$true] %s437
          %s439 = sshll.u32 %s435, 4
          %s440 = int_to_ptr.hbm [resolvable:$true] %s439
          %442 = dma.vmem_to_hbm [thread:$0]  %s438, 128, %s440, %s425
        $region52: #{_fused_output.1} parent=35 // pred_fallthru
          _
      $region36: #{_fused_output.1} parent=5 // pred_fallthru
        _
      %p443 = scmp.le.s32.totalorder 2, %s17
      // Predicated region
      $region53: #{_fused_output.1} parent=5 // pred_check
        %p444 = pneg %p443
      $region54: #{_fused_output.1} parent=5 // pred_check_branch
        %446 = sbr.rel (%p444) target = $region56
      $region55: #{_fused_output.1} parent=5 // pred_region
        %s447 = ssub.s32 %s17, 2
        // Predicated region
        $region57: #{_fused_output.1} parent=55 // pred_check
          %p448 = pneg %p140
        $region58: #{_fused_output.1} parent=55 // pred_check_branch
          %450 = sbr.rel (%p448) target = $region60
        $region59: #{_fused_output.1} parent=55 // pred_region
          %s451 = sand.u32 %s125, 1
          %s452 = scalar_lea.sflag [#allocation4], %s451
          %s453 = sand.u32 %s125, 1
          %s454 = smul.addr %s453, 8
          %s455 = scalar_lea.vmem [#allocation8], %s454
          %457 = dma.done %s452, 128
        $region60: #{_fused_output.1} parent=55 // pred_fallthru
          _
      $region56: #{_fused_output.1} parent=5 // pred_fallthru
        _
    $region6: #{_fused_output.1} parent=1 // loop_footer
      %s21 = sadd.s32 1, %s17
    $region7: #{_fused_output.1} parent=1 // loop_footer_branch
      %16 = sbr.rel target = $region3
    $region8: #{_fused_output.1} parent=1 // loop_exit
      _
    %458 = vsyncpa [#allocation3], 1
    %s459 = scalar_lea.sflag [#allocation3], 1
    %460 = vsyncpa %s459, 1
    %461 = vsyncpa [#allocation6], 1
    %462 = vsyncpa [#allocation4], 1
    %s463 = scalar_lea.sflag [#allocation4], 1
    %464 = vsyncpa %s463, 1

</llo_original>
